<compile_context>
chip_gen: v7x
topology: tpu7x:2x2x1
jax: 0.10.0
libtpu: 0.0.40
codegen_flags: <defaults>
</compile_context>

<pallas_src>
import jax
import jax.numpy as jnp
import numpy as np
from jax import lax
from jax.experimental import pallas as pl
from jax.experimental.pallas import tpu as pltpu


def _round_up(x, m):
    return ((x + m - 1) // m) * m


# -----------------------------------------------------------------------------
# Fused DoubleConv Pallas kernel (one batch element per grid step).
#
# Layout trick: the zero-padded (H+2, W+2) image is flattened row-major onto
# the lane axis.  The 3x3 tap (kh, kw) for quasi output lane q = y*(W+2)+x is
# input_flat[q + kh*(W+2) + kw] -- a pure static lane shift.  The 9 shifted
# slices are stacked along sublanes (im2col) so each conv is ONE matmul.
# Columns x in {W, W+1} of the quasi output are junk; they are zeroed before
# conv2 (they land exactly on conv2's padding lanes) and sliced off outside.
# -----------------------------------------------------------------------------
def fused_up_doubleconv(xall, w1s, w2s, H, W):
    """xall: (N, Cin, P2pad) bf16 -- padded image, channels = [x2 | upsampled x1].
       w1s:  (Cmid, 9*Cin)  bf16 -- conv1 weights, column index = tap*Cin + cin.
       w2s:  (Cout, 9*Cmid) bf16 -- conv2 weights, column index = tap*Cmid + cmid.
       Returns (N, Cout, H*(W+2)) f32 quasi-layout output."""
    N, Cin, P2pad = xall.shape
    Cmid = w1s.shape[0]
    Cout = w2s.shape[0]
    Wp = W + 2
    L = H * Wp
    offs = tuple(kh * Wp + kw for kh in range(3) for kw in range(3))
    assert P2pad >= L + offs[-1], "lane dim too short for the (kh=2,kw=2) tap"
    assert w1s.shape[1] == 9 * Cin and w2s.shape[1] == 9 * Cmid

    def kernel(x_ref, w1_ref, w2_ref, o_ref, cb1, hbuf, cb2):
        xv = x_ref[0]                                       # (Cin, P2pad) bf16

        # ---- conv1 + ReLU: im2col -> one matmul, K = 9*Cin ----
        for t, s in enumerate(offs):                        # 9 static taps
            cb1[t * Cin:(t + 1) * Cin, :] = xv[:, s:s + L]
        h = jnp.maximum(jnp.dot(w1_ref[...], cb1[...],
                                preferred_element_type=jnp.float32), 0.0)

        # Zero the 2 junk columns per row (they land exactly on conv2's padding
        # lanes), cast to bf16, re-pad into hbuf.  Only the small borders of
        # hbuf need zeroing; the middle is fully rewritten every step.
        col = lax.broadcasted_iota(jnp.int32, (1, L), 1) % Wp
        h = jnp.where(col < W, h, 0.0).astype(jnp.bfloat16)
        hbuf[:, :Wp + 1] = jnp.zeros((Cmid, Wp + 1), jnp.bfloat16)
        hbuf[:, Wp + 1:Wp + 1 + L] = h
        hbuf[:, Wp + 1 + L:] = jnp.zeros((Cmid, P2pad - Wp - 1 - L), jnp.bfloat16)

        # ---- conv2 + ReLU: im2col -> one matmul, K = 9*Cmid ----
        for t, s in enumerate(offs):
            cb2[t * Cmid:(t + 1) * Cmid, :] = hbuf[:, s:s + L]
        o_ref[0] = jnp.maximum(jnp.dot(w2_ref[...], cb2[...],
                                       preferred_element_type=jnp.float32), 0.0)

    return pl.pallas_call(
        kernel,
        out_shape=jax.ShapeDtypeStruct((N, Cout, L), jnp.float32),
        grid_spec=pltpu.PrefetchScalarGridSpec(
            num_scalar_prefetch=0,
            grid=(N,),
            in_specs=[
                pl.BlockSpec((1, Cin, P2pad), lambda n: (n, 0, 0)),
                pl.BlockSpec((Cmid, 9 * Cin), lambda n: (0, 0)),
                pl.BlockSpec((Cout, 9 * Cmid), lambda n: (0, 0)),
            ],
            out_specs=pl.BlockSpec((1, Cout, L), lambda n: (n, 0, 0)),
            scratch_shapes=[
                pltpu.VMEM((9 * Cin, L), jnp.bfloat16),    # conv1 im2col operand
                pltpu.VMEM((Cmid, P2pad), jnp.bfloat16),   # re-padded intermediate
                pltpu.VMEM((9 * Cmid, L), jnp.bfloat16),   # conv2 im2col operand
            ],
        ),
        compiler_params=pltpu.CompilerParams(
            dimension_semantics=("parallel",)),
    )(xall, w1s, w2s)


# -----------------------------------------------------------------------------
# Gather-free bilinear upsample (scale=2, align_corners=True), NCHW, via two
# small dense interpolation matrices (matches torch nn.Upsample semantics).
# -----------------------------------------------------------------------------
def upsample2x_align_corners_nchw(x):
    N, C, H, W = x.shape
    Ho, Wo = 2 * H, 2 * W

    def interp_matrix(n_in, n_out):
        if n_in == 1:
            return jnp.ones((n_out, 1), jnp.float32)
        src = jnp.arange(n_out, dtype=jnp.float32) * ((n_in - 1) / (n_out - 1))
        i0 = jnp.clip(jnp.floor(src).astype(jnp.int32), 0, n_in - 1)
        i1 = jnp.minimum(i0 + 1, n_in - 1)
        frac = src - i0.astype(jnp.float32)
        return (jax.nn.one_hot(i0, n_in, dtype=jnp.float32) * (1.0 - frac)[:, None]
                + jax.nn.one_hot(i1, n_in, dtype=jnp.float32) * frac[:, None])

    My = interp_matrix(H, Ho)          # (Ho, H)
    Mx = interp_matrix(W, Wo)          # (Wo, W)
    hp = jax.lax.Precision.HIGHEST
    out = jnp.einsum('oy,ncyx->ncox', My, x, precision=hp)
    out = jnp.einsum('px,ncox->ncop', Mx, out, precision=hp)
    return out


# -----------------------------------------------------------------------------
# Up.forward equivalent.  x1, x2 in NCHW; weights in HWIO.
# -----------------------------------------------------------------------------
def up_forward(x1_nchw, x2_nchw, w1_hwio, w2_hwio):
    x1 = x1_nchw.astype(jnp.float32)
    x2 = x2_nchw.astype(jnp.float32)
    N, Cskip, H, W = x2.shape
    Clow = x1.shape[1]
    Cin = Cskip + Clow
    Cmid = w1_hwio.shape[-1]
    Cout = w2_hwio.shape[-1]
    Wp, Hp = W + 2, H + 2
    L = H * Wp
    # lane dim: at least L + max tap offset (2*Wp+2), rounded up to 128
    P2pad = _round_up(L + 2 * Wp + 2, 128)

    # bilinear upsample x1 (scale 2, align_corners=True)
    x1u = upsample2x_align_corners_nchw(x1)

    # fold F.pad-to-x2-size and the conv SAME (1px) padding into one pad,
    # concat channels [x2, x1] (matches torch.cat order), flatten (H+2, W+2)
    # row-major onto lanes, extend to P2pad lanes with zeros, cast to bf16.
    diffY = H - x1u.shape[2]
    diffX = W - x1u.shape[3]
    x1p = jnp.pad(x1u, ((0, 0), (0, 0),
                        (1 + diffY // 2, 1 + diffY - diffY // 2),
                        (1 + diffX // 2, 1 + diffX - diffX // 2)))
    x2p = jnp.pad(x2, ((0, 0), (0, 0), (1, 1), (1, 1)))
    xall = jnp.concatenate([x2p, x1p], axis=1).reshape(N, Cin, Hp * Wp)
    xall = jnp.pad(xall, ((0, 0), (0, 0), (0, P2pad - Hp * Wp)))
    xall = xall.astype(jnp.bfloat16)

    # stacked im2col weights: column index = (kh*3+kw)*Cin + cin
    w1s = jnp.transpose(w1_hwio, (3, 0, 1, 2)).reshape(Cmid, 9 * Cin)
    w2s = jnp.transpose(w2_hwio, (3, 0, 1, 2)).reshape(Cout, 9 * Cmid)
    w1s = w1s.astype(jnp.bfloat16)
    w2s = w2s.astype(jnp.bfloat16)

    out_flat = fused_up_doubleconv(xall, w1s, w2s, H, W)
    # drop the 2 junk columns per row -> NCHW, no transpose needed
    return out_flat.reshape(N, Cout, H, Wp)[:, :, :, :W]


# -----------------------------------------------------------------------------
# Pure-JAX reference (gather-based upsample + lax.conv) for validation.
# -----------------------------------------------------------------------------
def _bilinear_ref_nchw(x, scale=2):
    N, C, H, W = x.shape
    Ho, Wo = H * scale, W * scale

    def coords(n_in, n_out):
        if n_out == 1 or n_in == 1:
            src = jnp.zeros((n_out,), jnp.float32)
        else:
            src = jnp.arange(n_out, dtype=jnp.float32) * (n_in - 1) / (n_out - 1)
        i0 = jnp.clip(jnp.floor(src).astype(jnp.int32), 0, n_in - 1)
        i1 = jnp.clip(i0 + 1, 0, n_in - 1)
        return i0, i1, src - i0.astype(jnp.float32)

    y0, y1, fy = coords(H, Ho)
    x0, x1i, fx = coords(W, Wo)
    rows = (x[:, :, y0, :] * (1.0 - fy)[None, None, :, None]
            + x[:, :, y1, :] * fy[None, None, :, None])
    return (rows[:, :, :, x0] * (1.0 - fx)[None, None, None, :]
            + rows[:, :, :, x1i] * fx[None, None, None, :])


def up_ref(x1, x2, w1, w2):
    x1u = _bilinear_ref_nchw(x1.astype(jnp.float32), 2)
    diffY = x2.shape[2] - x1u.shape[2]
    diffX = x2.shape[3] - x1u.shape[3]
    x1u = jnp.pad(x1u, ((0, 0), (0, 0),
                        (diffY // 2, diffY - diffY // 2),
                        (diffX // 2, diffX - diffX // 2)))
    x = jnp.concatenate([x2.astype(jnp.float32), x1u], axis=1)
    dn = ('NCHW', 'HWIO', 'NCHW')
    h = jnp.maximum(lax.conv_general_dilated(x, w1, (1, 1), 'SAME',
                                             dimension_numbers=dn), 0.0)
    y = jnp.maximum(lax.conv_general_dilated(h, w2, (1, 1), 'SAME',
                                             dimension_numbers=dn), 0.0)
    return y


if __name__ == "__main__":
    # Module config: Up(in_channels=8, out_channels=4, bilinear=True)
    in_channels, out_channels = 8, 4
    mid_channels = in_channels // 2          # DoubleConv(in, out, in // 2)

    N, H, W = 2, 16, 16
    c_skip = in_channels // 2                # channels of skip tensor x2
    c_low = in_channels - c_skip             # channels of low-res tensor x1

    key = jax.random.PRNGKey(0)
    k_x1, k_x2, k_w1, k_w2 = jax.random.split(key, 4)

    # NCHW inputs (PyTorch convention); x1 is half spatial resolution of x2
    x1 = jax.random.normal(k_x1, (N, c_low, H // 2, W // 2), jnp.float32)
    x2 = jax.random.normal(k_x2, (N, c_skip, H, W), jnp.float32)

    # HWIO weights (conv1: in_channels -> mid, conv2: mid -> out), no bias
    w1 = jax.random.normal(k_w1, (3, 3, in_channels, mid_channels), jnp.float32) * 0.1
    w2 = jax.random.normal(k_w2, (3, 3, mid_channels, out_channels), jnp.float32) * 0.1

    out = jax.jit(up_forward)(x1, x2, w1, w2)
    out = jax.block_until_ready(out)
    assert out.shape == (N, out_channels, H, W), out.shape

    ref = up_ref(x1, x2, w1, w2)
    # bf16 MXU operands (f32 accumulation) vs f32 reference -> looser tolerance
    np.testing.assert_allclose(np.asarray(out), np.asarray(ref),
                               rtol=3e-2, atol=3e-2)

    print("KERNEL_OK")
</pallas_src>

<mosaic_0001>
module attributes {stable_mosaic.version = 11 : i64} {
  func.func @kernel(%arg0: i32, %arg1: memref<1x8x384xbf16, #tpu.memory_space<vmem>>, %arg2: memref<4x72xbf16, #tpu.memory_space<vmem>>, %arg3: memref<4x36xbf16, #tpu.memory_space<vmem>>, %arg4: memref<1x4x288xf32, #tpu.memory_space<vmem>>, %arg5: memref<72x288xbf16, #tpu.memory_space<vmem>>, %arg6: memref<4x384xbf16, #tpu.memory_space<vmem>>, %arg7: memref<36x288xbf16, #tpu.memory_space<vmem>>) attributes {dimension_semantics = [#tpu.dimension_semantics<parallel>], iteration_bounds = array<i64: 2>, scalar_prefetch = 0 : i64, scratch_operands = 3 : i64, tpu.core_type = #tpu.core_type<tc>, window_params = [{transform_indices = @transform_0, window_bounds = array<i64: 1, 8, 384>}, {pipeline_mode = #tpu.pipeline_mode<synchronous>, transform_indices = @transform_1, window_bounds = array<i64: 4, 72>}, {pipeline_mode = #tpu.pipeline_mode<synchronous>, transform_indices = @transform_2, window_bounds = array<i64: 4, 36>}, {transform_indices = @transform_3, window_bounds = array<i64: 1, 4, 288>}]} {
    %c0 = arith.constant 0 : index
    %c0_0 = arith.constant 0 : index
    %c0_1 = arith.constant 0 : index
    %0 = vector.load %arg1[%c0, %c0_0, %c0_1] : memref<1x8x384xbf16, #tpu.memory_space<vmem>>, vector<1x8x384xbf16>
    %1 = vector.shape_cast %0 : vector<1x8x384xbf16> to vector<8x384xbf16>
    %2 = vector.extract_strided_slice %1 {offsets = [0, 0], sizes = [8, 288], strides = [1, 1]} : vector<8x384xbf16> to vector<8x288xbf16>
    %c0_2 = arith.constant 0 : index
    %c0_3 = arith.constant 0 : index
    %3 = vector.load %arg5[%c0_2, %c0_3] : memref<72x288xbf16, #tpu.memory_space<vmem>>, vector<8x288xbf16>
    tpu.vector_store %arg5[%c0_2, %c0_3], %2 {strides = array<i32>} : memref<72x288xbf16, #tpu.memory_space<vmem>>, vector<8x288xbf16>,
    %4 = vector.extract_strided_slice %1 {offsets = [0, 1], sizes = [8, 288], strides = [1, 1]} : vector<8x384xbf16> to vector<8x288xbf16>
    %c8 = arith.constant 8 : index
    %c0_4 = arith.constant 0 : index
    %5 = vector.load %arg5[%c8, %c0_4] : memref<72x288xbf16, #tpu.memory_space<vmem>>, vector<8x288xbf16>
    tpu.vector_store %arg5[%c8, %c0_4], %4 {strides = array<i32>} : memref<72x288xbf16, #tpu.memory_space<vmem>>, vector<8x288xbf16>,
    %6 = vector.extract_strided_slice %1 {offsets = [0, 2], sizes = [8, 288], strides = [1, 1]} : vector<8x384xbf16> to vector<8x288xbf16>
    %c16 = arith.constant 16 : index
    %c0_5 = arith.constant 0 : index
    %7 = vector.load %arg5[%c16, %c0_5] : memref<72x288xbf16, #tpu.memory_space<vmem>>, vector<8x288xbf16>
    tpu.vector_store %arg5[%c16, %c0_5], %6 {strides = array<i32>} : memref<72x288xbf16, #tpu.memory_space<vmem>>, vector<8x288xbf16>,
    %8 = vector.extract_strided_slice %1 {offsets = [0, 18], sizes = [8, 288], strides = [1, 1]} : vector<8x384xbf16> to vector<8x288xbf16>
    %c24 = arith.constant 24 : index
    %c0_6 = arith.constant 0 : index
    %9 = vector.load %arg5[%c24, %c0_6] : memref<72x288xbf16, #tpu.memory_space<vmem>>, vector<8x288xbf16>
    tpu.vector_store %arg5[%c24, %c0_6], %8 {strides = array<i32>} : memref<72x288xbf16, #tpu.memory_space<vmem>>, vector<8x288xbf16>,
    %10 = vector.extract_strided_slice %1 {offsets = [0, 19], sizes = [8, 288], strides = [1, 1]} : vector<8x384xbf16> to vector<8x288xbf16>
    %c32 = arith.constant 32 : index
    %c0_7 = arith.constant 0 : index
    %11 = vector.load %arg5[%c32, %c0_7] : memref<72x288xbf16, #tpu.memory_space<vmem>>, vector<8x288xbf16>
    tpu.vector_store %arg5[%c32, %c0_7], %10 {strides = array<i32>} : memref<72x288xbf16, #tpu.memory_space<vmem>>, vector<8x288xbf16>,
    %12 = vector.extract_strided_slice %1 {offsets = [0, 20], sizes = [8, 288], strides = [1, 1]} : vector<8x384xbf16> to vector<8x288xbf16>
    %c40 = arith.constant 40 : index
    %c0_8 = arith.constant 0 : index
    %13 = vector.load %arg5[%c40, %c0_8] : memref<72x288xbf16, #tpu.memory_space<vmem>>, vector<8x288xbf16>
    tpu.vector_store %arg5[%c40, %c0_8], %12 {strides = array<i32>} : memref<72x288xbf16, #tpu.memory_space<vmem>>, vector<8x288xbf16>,
    %14 = vector.extract_strided_slice %1 {offsets = [0, 36], sizes = [8, 288], strides = [1, 1]} : vector<8x384xbf16> to vector<8x288xbf16>
    %c48 = arith.constant 48 : index
    %c0_9 = arith.constant 0 : index
    %15 = vector.load %arg5[%c48, %c0_9] : memref<72x288xbf16, #tpu.memory_space<vmem>>, vector<8x288xbf16>
    tpu.vector_store %arg5[%c48, %c0_9], %14 {strides = array<i32>} : memref<72x288xbf16, #tpu.memory_space<vmem>>, vector<8x288xbf16>,
    %16 = vector.extract_strided_slice %1 {offsets = [0, 37], sizes = [8, 288], strides = [1, 1]} : vector<8x384xbf16> to vector<8x288xbf16>
    %c56 = arith.constant 56 : index
    %c0_10 = arith.constant 0 : index
    %17 = vector.load %arg5[%c56, %c0_10] : memref<72x288xbf16, #tpu.memory_space<vmem>>, vector<8x288xbf16>
    tpu.vector_store %arg5[%c56, %c0_10], %16 {strides = array<i32>} : memref<72x288xbf16, #tpu.memory_space<vmem>>, vector<8x288xbf16>,
    %18 = vector.extract_strided_slice %1 {offsets = [0, 38], sizes = [8, 288], strides = [1, 1]} : vector<8x384xbf16> to vector<8x288xbf16>
    %c64 = arith.constant 64 : index
    %c0_11 = arith.constant 0 : index
    %19 = vector.load %arg5[%c64, %c0_11] : memref<72x288xbf16, #tpu.memory_space<vmem>>, vector<8x288xbf16>
    tpu.vector_store %arg5[%c64, %c0_11], %18 {strides = array<i32>} : memref<72x288xbf16, #tpu.memory_space<vmem>>, vector<8x288xbf16>,
    %c0_12 = arith.constant 0 : index
    %c0_13 = arith.constant 0 : index
    %20 = vector.load %arg2[%c0_12, %c0_13] : memref<4x72xbf16, #tpu.memory_space<vmem>>, vector<4x72xbf16>
    %c0_14 = arith.constant 0 : index
    %c0_15 = arith.constant 0 : index
    %21 = vector.load %arg5[%c0_14, %c0_15] : memref<72x288xbf16, #tpu.memory_space<vmem>>, vector<72x288xbf16>
    %cst = arith.constant dense<0.000000e+00> : vector<4x288xf32>
    %22 = tpu.matmul %20, %21, %cst {dimension_numbers = #tpu.dot_dimension_numbers<[1], [0], [0], [1], [0, 0, 1, 1], [], []>} : vector<4x72xbf16>, vector<72x288xbf16>, vector<4x288xf32> -> vector<4x288xf32>
    %cst_16 = arith.constant 0.000000e+00 : f32
    %23 = vector.broadcast %cst_16 : f32 to vector<4x288xf32>
    %24 = arith.maximumf %22, %23 : vector<4x288xf32>
    %25 = tpu.iota {dimensions = array<i32: 1>} : vector<1x288xi32>
    %c18_i32 = arith.constant 18 : i32
    %c0_i32 = arith.constant 0 : i32
    %26 = arith.cmpi eq, %c18_i32, %c0_i32 : i32
    %c1_i32 = arith.constant 1 : i32
    %27 = arith.select %26, %c1_i32, %c18_i32 : i32
    %28 = vector.broadcast %27 : i32 to vector<1x288xi32>
    %29 = arith.remsi %25, %28 : vector<1x288xi32>
    %c0_i32_17 = arith.constant 0 : i32
    %30 = vector.broadcast %c0_i32_17 : i32 to vector<1x288xi32>
    %31 = arith.cmpi ne, %29, %30 : vector<1x288xi32>
    %c0_i32_18 = arith.constant 0 : i32
    %32 = vector.broadcast %c0_i32_18 : i32 to vector<1x288xi32>
    %33 = arith.cmpi slt, %29, %32 : vector<1x288xi32>
    %c0_i32_19 = arith.constant 0 : i32
    %34 = arith.cmpi slt, %27, %c0_i32_19 : i32
    %35 = vector.broadcast %34 : i1 to vector<1x288xi1>
    %36 = vector.broadcast %35 : vector<1x288xi1> to vector<1x288xi1>
    %37 = arith.xori %33, %36 : vector<1x288xi1>
    %38 = arith.andi %37, %31 : vector<1x288xi1>
    %39 = vector.broadcast %27 : i32 to vector<1x288xi32>
    %40 = arith.addi %29, %39 : vector<1x288xi32>
    %41 = arith.select %38, %40, %29 : vector<1x288xi1>, vector<1x288xi32>
    %c16_i32 = arith.constant 16 : i32
    %42 = vector.broadcast %c16_i32 : i32 to vector<1x288xi32>
    %43 = arith.cmpi slt, %41, %42 : vector<1x288xi32>
    %cst_20 = arith.constant 0.000000e+00 : f32
    %44 = vector.shape_cast %43 : vector<1x288xi1> to vector<1x288xi1>
    %45 = vector.broadcast %44 : vector<1x288xi1> to vector<4x288xi1>
    %46 = vector.broadcast %cst_20 : f32 to vector<4x288xf32>
    %47 = arith.select %45, %24, %46 : vector<4x288xi1>, vector<4x288xf32>
    %48 = arith.truncf %47 : vector<4x288xf32> to vector<4x288xbf16>
    %cst_21 = arith.constant 0.000000e+00 : bf16
    %49 = vector.broadcast %cst_21 : bf16 to vector<4x19xbf16>
    %c0_22 = arith.constant 0 : index
    %c0_23 = arith.constant 0 : index
    %50 = vector.load %arg6[%c0_22, %c0_23] : memref<4x384xbf16, #tpu.memory_space<vmem>>, vector<4x19xbf16>
    tpu.vector_store %arg6[%c0_22, %c0_23], %49 {strides = array<i32>} : memref<4x384xbf16, #tpu.memory_space<vmem>>, vector<4x19xbf16>,
    %c0_24 = arith.constant 0 : index
    %c19 = arith.constant 19 : index
    %51 = vector.load %arg6[%c0_24, %c19] : memref<4x384xbf16, #tpu.memory_space<vmem>>, vector<4x288xbf16>
    tpu.vector_store %arg6[%c0_24, %c19], %48 {strides = array<i32>} : memref<4x384xbf16, #tpu.memory_space<vmem>>, vector<4x288xbf16>,
    %cst_25 = arith.constant 0.000000e+00 : bf16
    %52 = vector.broadcast %cst_25 : bf16 to vector<4x77xbf16>
    %c0_26 = arith.constant 0 : index
    %c307 = arith.constant 307 : index
    %53 = vector.load %arg6[%c0_26, %c307] : memref<4x384xbf16, #tpu.memory_space<vmem>>, vector<4x77xbf16>
    tpu.vector_store %arg6[%c0_26, %c307], %52 {strides = array<i32>} : memref<4x384xbf16, #tpu.memory_space<vmem>>, vector<4x77xbf16>,
    %c0_27 = arith.constant 0 : index
    %c0_28 = arith.constant 0 : index
    %54 = vector.load %arg6[%c0_27, %c0_28] : memref<4x384xbf16, #tpu.memory_space<vmem>>, vector<4x288xbf16>
    %c0_29 = arith.constant 0 : index
    %c0_30 = arith.constant 0 : index
    %55 = vector.load %arg7[%c0_29, %c0_30] : memref<36x288xbf16, #tpu.memory_space<vmem>>, vector<4x288xbf16>
    tpu.vector_store %arg7[%c0_29, %c0_30], %54 {strides = array<i32>} : memref<36x288xbf16, #tpu.memory_space<vmem>>, vector<4x288xbf16>,
    %c0_31 = arith.constant 0 : index
    %c1 = arith.constant 1 : index
    %56 = vector.load %arg6[%c0_31, %c1] : memref<4x384xbf16, #tpu.memory_space<vmem>>, vector<4x288xbf16>
    %c4 = arith.constant 4 : index
    %c0_32 = arith.constant 0 : index
    %57 = vector.load %arg7[%c4, %c0_32] : memref<36x288xbf16, #tpu.memory_space<vmem>>, vector<4x288xbf16>
    tpu.vector_store %arg7[%c4, %c0_32], %56 {strides = array<i32>} : memref<36x288xbf16, #tpu.memory_space<vmem>>, vector<4x288xbf16>,
    %c0_33 = arith.constant 0 : index
    %c2 = arith.constant 2 : index
    %58 = vector.load %arg6[%c0_33, %c2] : memref<4x384xbf16, #tpu.memory_space<vmem>>, vector<4x288xbf16>
    %c8_34 = arith.constant 8 : index
    %c0_35 = arith.constant 0 : index
    %59 = vector.load %arg7[%c8_34, %c0_35] : memref<36x288xbf16, #tpu.memory_space<vmem>>, vector<4x288xbf16>
    tpu.vector_store %arg7[%c8_34, %c0_35], %58 {strides = array<i32>} : memref<36x288xbf16, #tpu.memory_space<vmem>>, vector<4x288xbf16>,
    %c0_36 = arith.constant 0 : index
    %c18 = arith.constant 18 : index
    %60 = vector.load %arg6[%c0_36, %c18] : memref<4x384xbf16, #tpu.memory_space<vmem>>, vector<4x288xbf16>
    %c12 = arith.constant 12 : index
    %c0_37 = arith.constant 0 : index
    %61 = vector.load %arg7[%c12, %c0_37] : memref<36x288xbf16, #tpu.memory_space<vmem>>, vector<4x288xbf16>
    tpu.vector_store %arg7[%c12, %c0_37], %60 {strides = array<i32>} : memref<36x288xbf16, #tpu.memory_space<vmem>>, vector<4x288xbf16>,
    %c0_38 = arith.constant 0 : index
    %c19_39 = arith.constant 19 : index
    %62 = vector.load %arg6[%c0_38, %c19_39] : memref<4x384xbf16, #tpu.memory_space<vmem>>, vector<4x288xbf16>
    %c16_40 = arith.constant 16 : index
    %c0_41 = arith.constant 0 : index
    %63 = vector.load %arg7[%c16_40, %c0_41] : memref<36x288xbf16, #tpu.memory_space<vmem>>, vector<4x288xbf16>
    tpu.vector_store %arg7[%c16_40, %c0_41], %62 {strides = array<i32>} : memref<36x288xbf16, #tpu.memory_space<vmem>>, vector<4x288xbf16>,
    %c0_42 = arith.constant 0 : index
    %c20 = arith.constant 20 : index
    %64 = vector.load %arg6[%c0_42, %c20] : memref<4x384xbf16, #tpu.memory_space<vmem>>, vector<4x288xbf16>
    %c20_43 = arith.constant 20 : index
    %c0_44 = arith.constant 0 : index
    %65 = vector.load %arg7[%c20_43, %c0_44] : memref<36x288xbf16, #tpu.memory_space<vmem>>, vector<4x288xbf16>
    tpu.vector_store %arg7[%c20_43, %c0_44], %64 {strides = array<i32>} : memref<36x288xbf16, #tpu.memory_space<vmem>>, vector<4x288xbf16>,
    %c0_45 = arith.constant 0 : index
    %c36 = arith.constant 36 : index
    %66 = vector.load %arg6[%c0_45, %c36] : memref<4x384xbf16, #tpu.memory_space<vmem>>, vector<4x288xbf16>
    %c24_46 = arith.constant 24 : index
    %c0_47 = arith.constant 0 : index
    %67 = vector.load %arg7[%c24_46, %c0_47] : memref<36x288xbf16, #tpu.memory_space<vmem>>, vector<4x288xbf16>
    tpu.vector_store %arg7[%c24_46, %c0_47], %66 {strides = array<i32>} : memref<36x288xbf16, #tpu.memory_space<vmem>>, vector<4x288xbf16>,
    %c0_48 = arith.constant 0 : index
    %c37 = arith.constant 37 : index
    %68 = vector.load %arg6[%c0_48, %c37] : memref<4x384xbf16, #tpu.memory_space<vmem>>, vector<4x288xbf16>
    %c28 = arith.constant 28 : index
    %c0_49 = arith.constant 0 : index
    %69 = vector.load %arg7[%c28, %c0_49] : memref<36x288xbf16, #tpu.memory_space<vmem>>, vector<4x288xbf16>
    tpu.vector_store %arg7[%c28, %c0_49], %68 {strides = array<i32>} : memref<36x288xbf16, #tpu.memory_space<vmem>>, vector<4x288xbf16>,
    %c0_50 = arith.constant 0 : index
    %c38 = arith.constant 38 : index
    %70 = vector.load %arg6[%c0_50, %c38] : memref<4x384xbf16, #tpu.memory_space<vmem>>, vector<4x288xbf16>
    %c32_51 = arith.constant 32 : index
    %c0_52 = arith.constant 0 : index
    %71 = vector.load %arg7[%c32_51, %c0_52] : memref<36x288xbf16, #tpu.memory_space<vmem>>, vector<4x288xbf16>
    tpu.vector_store %arg7[%c32_51, %c0_52], %70 {strides = array<i32>} : memref<36x288xbf16, #tpu.memory_space<vmem>>, vector<4x288xbf16>,
    %c0_53 = arith.constant 0 : index
    %c0_54 = arith.constant 0 : index
    %72 = vector.load %arg3[%c0_53, %c0_54] : memref<4x36xbf16, #tpu.memory_space<vmem>>, vector<4x36xbf16>
    %c0_55 = arith.constant 0 : index
    %c0_56 = arith.constant 0 : index
    %73 = vector.load %arg7[%c0_55, %c0_56] : memref<36x288xbf16, #tpu.memory_space<vmem>>, vector<36x288xbf16>
    %cst_57 = arith.constant dense<0.000000e+00> : vector<4x288xf32>
    %74 = tpu.matmul %72, %73, %cst_57 {dimension_numbers = #tpu.dot_dimension_numbers<[1], [0], [0], [1], [0, 0, 1, 1], [], []>} : vector<4x36xbf16>, vector<36x288xbf16>, vector<4x288xf32> -> vector<4x288xf32>
    %cst_58 = arith.constant 0.000000e+00 : f32
    %75 = vector.broadcast %cst_58 : f32 to vector<4x288xf32>
    %76 = arith.maximumf %74, %75 : vector<4x288xf32>
    %c0_59 = arith.constant 0 : index
    %c0_60 = arith.constant 0 : index
    %c0_61 = arith.constant 0 : index
    %77 = vector.load %arg4[%c0_59, %c0_60, %c0_61] : memref<1x4x288xf32, #tpu.memory_space<vmem>>, vector<1x4x288xf32>
    %78 = vector.shape_cast %77 : vector<1x4x288xf32> to vector<4x288xf32>
    %79 = vector.shape_cast %76 : vector<4x288xf32> to vector<1x4x288xf32>
    tpu.vector_store %arg4[%c0_59, %c0_60, %c0_61], %79 {strides = array<i32>} : memref<1x4x288xf32, #tpu.memory_space<vmem>>, vector<1x4x288xf32>,
    return
  }
  func.func @transform_0(%arg0: i32) -> (i32, i32, i32) {
    %c0_i32 = arith.constant 0 : i32
    %c0_i32_0 = arith.constant 0 : i32
    %c0_i32_1 = arith.constant 0 : i32
    return %arg0, %c0_i32, %c0_i32_0 : i32, i32, i32
  }
  func.func @transform_1(%arg0: i32) -> (i32, i32) {
    %c0_i32 = arith.constant 0 : i32
    %c0_i32_0 = arith.constant 0 : i32
    %c0_i32_1 = arith.constant 0 : i32
    return %c0_i32, %c0_i32_0 : i32, i32
  }
  func.func @transform_2(%arg0: i32) -> (i32, i32) {
    %c0_i32 = arith.constant 0 : i32
    %c0_i32_0 = arith.constant 0 : i32
    %c0_i32_1 = arith.constant 0 : i32
    return %c0_i32, %c0_i32_0 : i32, i32
  }
  func.func @transform_3(%arg0: i32) -> (i32, i32, i32) {
    %c0_i32 = arith.constant 0 : i32
    %c0_i32_0 = arith.constant 0 : i32
    %c0_i32_1 = arith.constant 0 : i32
    return %arg0, %c0_i32, %c0_i32_0 : i32, i32, i32
  }
}

</mosaic_0001>

<llo_original>
// kernel: up_forward.1
$region0: #{up_forward.1}
  #allocation0 [shape = 'u32[]', space=smem, size = 0x4, offset = 0x4, fixed_abs, tag = 'smem constant byte address 0x4 - core index']
  #allocation1 [shape = 'u32[144,128]{1,0:T(1,128)}', space=vmem, size = 0x12000, scoped, tag = 'internal scratch']
  #allocation2 [shape = 'bf16[72,288]{1,0:T(8,128)(2,1)}', space=vmem, size = 0xd800, scoped, tag = 'scratch operand']
  #allocation3 [shape = 'bf16[4,384]{1,0:T(4,128)(2,1)}', space=vmem, size = 0xc00, scoped, tag = 'scratch operand']
  #allocation4 [shape = 'bf16[36,288]{1,0:T(8,128)(2,1)}', space=vmem, size = 0x7800, scoped, tag = 'scratch operand']
  %s0 = inlined_call_operand.vmem [shape: bf16[2,8,384], index: 0, kind: input, shape index: {}]
  %s1 = inlined_call_operand.vmem [shape: bf16[4,72], index: 1, kind: input, shape index: {}]
  %s2 = inlined_call_operand.vmem [shape: bf16[4,36], index: 2, kind: input, shape index: {}]
  %s3 = inlined_call_operand.vmem [shape: f32[2,4,288], index: 3, kind: output, shape index: {}]
  %s4 = sld [smem:[#allocation0]]
  $region45: #{up_forward.1} parent=0
    _
  %s6 = ssub.s32 1, %s4
  %s7 = scalar_select 0, %s6, %s4
  loop: start=0, step=1, limit=4
  $region2: #{up_forward.1} parent=0 // loop_pre_header
    _
  $region3: #{up_forward.1} parent=0 // loop_header
    %s9 = sphi 0, %s13
    %p10 = scmp.ge.s32.totalorder %s9, 4
    %s19 = sphi 0, %s21
    %s22 = sphi 0, %s19
    %s23 = sphi 0, %s22
    %s39 = sphi 0, %s23
    %s43 = sphi 0, %s43
    %s45 = sphi 0, %s43
    %s46 = sphi 0, %s45
    %s60 = sphi 0, %s46
    %s64 = sphi 0, %s64
    %s66 = sphi 0, %s64
    %s67 = sphi 0, %s66
    %s81 = sphi 0, %s67
    %s87 = sphi 0, %s89
    %s90 = sphi 0, %s87
    %s91 = sphi 0, %s90
    %s107 = sphi 0, %s91
  $region4: #{up_forward.1} parent=0 // loop_header_branch
    %12 = sbr.rel (%p10) target = $region8
  $region5: #{up_forward.1} parent=0 // loop_body
    %s14 = ssub.s32 %s9, 1
    %s15 = ssub.s32 %s9, 2
    %s16 = sadd.s32 %s9, 1
    %s17 = ssub.s32 %s9, %s16
    %p18 = scmp.eq.s32.totalorder %s17, 0
    %s20 = sadd.s32 %s19, 1
    %s21 = scalar_select %p18, %s19, %s20
    %p24 = pneg %p18
    %p25 = scmp.eq.s32.totalorder %s9, 1
    %p26 = por %p24, %p25
    %p27 = scmp.ne.s32.totalorder %s19, %s22
    %p28 = scmp.eq.s32.totalorder %s9, 0
    %p29 = por %p27, %p28
    %p30 = scmp.ne.s32.totalorder %s19, %s22
    %p31 = scmp.eq.s32.totalorder %s14, 1
    %p32 = por %p30, %p31
    %p33 = scmp.ne.s32.totalorder %s22, %s23
    %p34 = scmp.eq.s32.totalorder %s14, 0
    %p35 = por %p33, %p34
    %p36 = scmp.ne.s32.totalorder %s22, %s23
    %p37 = scmp.eq.s32.totalorder %s15, 1
    %p38 = por %p36, %p37
    %p40 = scmp.ne.s32.totalorder %s23, %s39
    %p41 = scmp.eq.s32.totalorder %s15, 0
    %p42 = por %p40, %p41
    %s44 = sadd.s32 %s43, 1
    %p47 = scmp.eq.s32.totalorder %s9, 1
    %p48 = scmp.ne.s32.totalorder %s43, %s45
    %p49 = scmp.eq.s32.totalorder %s9, 0
    %p50 = por %p48, %p49
    %p51 = scmp.ne.s32.totalorder %s43, %s45
    %p52 = scmp.eq.s32.totalorder %s14, 1
    %p53 = por %p51, %p52
    %p54 = scmp.ne.s32.totalorder %s45, %s46
    %p55 = scmp.eq.s32.totalorder %s14, 0
    %p56 = por %p54, %p55
    %p57 = scmp.ne.s32.totalorder %s45, %s46
    %p58 = scmp.eq.s32.totalorder %s15, 1
    %p59 = por %p57, %p58
    %p61 = scmp.ne.s32.totalorder %s46, %s60
    %p62 = scmp.eq.s32.totalorder %s15, 0
    %p63 = por %p61, %p62
    %s65 = sadd.s32 %s64, 1
    %p68 = scmp.eq.s32.totalorder %s9, 1
    %p69 = scmp.ne.s32.totalorder %s64, %s66
    %p70 = scmp.eq.s32.totalorder %s9, 0
    %p71 = por %p69, %p70
    %p72 = scmp.ne.s32.totalorder %s64, %s66
    %p73 = scmp.eq.s32.totalorder %s14, 1
    %p74 = por %p72, %p73
    %p75 = scmp.ne.s32.totalorder %s66, %s67
    %p76 = scmp.eq.s32.totalorder %s14, 0
    %p77 = por %p75, %p76
    %p78 = scmp.ne.s32.totalorder %s66, %s67
    %p79 = scmp.eq.s32.totalorder %s15, 1
    %p80 = por %p78, %p79
    %p82 = scmp.ne.s32.totalorder %s67, %s81
    %p83 = scmp.eq.s32.totalorder %s15, 0
    %p84 = por %p82, %p83
    %s85 = ssub.s32 %s9, %s16
    %p86 = scmp.eq.s32.totalorder %s85, 0
    %s88 = sadd.s32 %s87, 1
    %s89 = scalar_select %p86, %s87, %s88
    %p92 = pneg %p86
    %p93 = scmp.eq.s32.totalorder %s9, 1
    %p94 = por %p92, %p93
    %p95 = scmp.ne.s32.totalorder %s87, %s90
    %p96 = scmp.eq.s32.totalorder %s9, 0
    %p97 = por %p95, %p96
    %p98 = scmp.ne.s32.totalorder %s87, %s90
    %p99 = scmp.eq.s32.totalorder %s14, 1
    %p100 = por %p98, %p99
    %p101 = scmp.ne.s32.totalorder %s90, %s91
    %p102 = scmp.eq.s32.totalorder %s14, 0
    %p103 = por %p101, %p102
    %p104 = scmp.ne.s32.totalorder %s90, %s91
    %p105 = scmp.eq.s32.totalorder %s15, 1
    %p106 = por %p104, %p105
    %p108 = scmp.ne.s32.totalorder %s91, %s107
    %p109 = scmp.eq.s32.totalorder %s15, 0
    %p110 = por %p108, %p109
    %p111 = scmp.le.s32.totalorder 1, %s9
    %p112 = scmp.lt.s32.totalorder %s9, 3
    %p113 = pnand %p111, %p112
    %p114 = pneg %p113
    // Predicated region
    $region9: #{up_forward.1} parent=5 // pred_check
      _
    $region10: #{up_forward.1} parent=5 // pred_check_branch
      %116 = sbr.rel (%p113) target = $region12
    $region11: #{up_forward.1} parent=5 // pred_region
      %s117 = ssub.s32 %s9, 1
      // Predicated region
      $region13: #{up_forward.1} parent=11 // pred_check
        %p118 = pneg %p56
      $region14: #{up_forward.1} parent=11 // pred_check_branch
        %120 = sbr.rel (%p118) target = $region16
      $region15: #{up_forward.1} parent=11 // pred_region
        _
      $region16: #{up_forward.1} parent=11 // pred_fallthru
        _
      // Predicated region
      $region17: #{up_forward.1} parent=11 // pred_check
        %p121 = pneg %p77
      $region18: #{up_forward.1} parent=11 // pred_check_branch
        %123 = sbr.rel (%p121) target = $region20
      $region19: #{up_forward.1} parent=11 // pred_region
        _
      $region20: #{up_forward.1} parent=11 // pred_fallthru
        _
    $region12: #{up_forward.1} parent=5 // pred_fallthru
      _
    %p124 = scmp.lt.s32.totalorder %s9, 2
    // Predicated region
    $region21: #{up_forward.1} parent=5 // pred_check
      %p125 = pneg %p124
    $region22: #{up_forward.1} parent=5 // pred_check_branch
      %127 = sbr.rel (%p125) target = $region24
    $region23: #{up_forward.1} parent=5 // pred_region
      // Predicated region
      $region25: #{up_forward.1} parent=23 // pred_check
        %p128 = pneg %p29
      $region26: #{up_forward.1} parent=23 // pred_check_branch
        %130 = sbr.rel (%p128) target = $region28
      $region27: #{up_forward.1} parent=23 // pred_region
        %p131 = scmp.lt.s32.totalorder %s9, 1
        %s132 = scalar_select %p131, %s9, 1
        %s133 = smul.addr %s132, 3
        %s134 = smul.addr %s133, 4
        %s135 = scalar_lea.vmem %s0, %s134
      $region28: #{up_forward.1} parent=23 // pred_fallthru
        _
    $region24: #{up_forward.1} parent=5 // pred_fallthru
      _
    %p136 = scmp.le.s32.totalorder 1, %s9
    %p137 = scmp.lt.s32.totalorder %s9, 3
    %p138 = pnand %p136, %p137
    %p139 = pneg %p138
    // Predicated region
    $region29: #{up_forward.1} parent=5 // pred_check
      _
    $region30: #{up_forward.1} parent=5 // pred_check_branch
      %141 = sbr.rel (%p138) target = $region32
    $region31: #{up_forward.1} parent=5 // pred_region
      %s142 = ssub.s32 %s9, 1
      %p143 = scmp.lt.s32.totalorder %s14, 1
      %s144 = scalar_select %p143, %s14, 1
      %s145 = smul.addr %s144, 3
      %s146 = smul.addr %s145, 4
      %s147 = scalar_lea.vmem %s0, %s146
      %p148 = pneg %p35
      %p149 = pneg %p32
      %p150 = pneg %p56
      %p151 = pneg %p53
      %p152 = pneg %p77
      %p153 = pneg %p74
      %p154 = pneg %p103
      %p155 = pneg %p100
      %p156 = scmp.lt.s32.totalorder %s14, 1
      %s157 = scalar_select %p156, %s14, 1
      %s158 = smul.addr %s157, 3
      %s159 = smul.addr %s158, 4
      %s160 = scalar_lea.vmem %s3, %s159
      %p161 = scmp.lt.s32.totalorder %s14, 1
      %s162 = scalar_select %p161, %s14, 1
      %s163 = smul.addr %s162, 3
      %s164 = smul.addr %s163, 4
      %s165 = scalar_lea.vmem %s0, %s164
      %p166 = scmp.lt.s32.totalorder %s14, 1
      %s167 = scalar_select %p166, %s14, 1
      %s168 = smul.addr %s167, 3
      %s169 = smul.addr %s168, 4
      %s170 = scalar_lea.vmem %s3, %s169
      %v172 = vld [vmem:[%s165] sm:$0xff]
      %v173 = vld [vmem:[%s165 + $0x8] sm:$0xf]
      %174 = vst [vmem:[#allocation2] sm:$0xff] %v172
      %vm175 = vcmask 257024
      %176 = vst.msk [vmem:[#allocation2 + $0x8] sm:$0xf] %vm175, %v173
      %179 = vrot.lane.b32.xlu0 %v172, 127
      %v180 = vpop.permute.xlu0 %179
      %181 = vrot.lane.b32.xlu0 %v173, 127
      %v182 = vpop.permute.xlu0 %181
      %v183 = vrot.slane %v180, 4
      %v184 = vrot.slane %v182, 4
      %vm185 = vcmask 1043456
      %v186 = vsel %vm185, %v183, %v184
      %vm187 = vcmask 1039360
      %v188 = vsel %vm187, %v180, %v186
      %191 = vst [vmem:[#allocation2 + $0xc] sm:$0xff] %v188
      %192 = vst.msk [vmem:[#allocation2 + $0x14] sm:$0xf] %vm175, %v182
      %193 = vrot.lane.b32.xlu0 %v172, 126
      %v194 = vpop.permute.xlu0 %193
      %195 = vrot.lane.b32.xlu0 %v173, 126
      %v196 = vpop.permute.xlu0 %195
      %v197 = vrot.slane %v194, 4
      %v198 = vrot.slane %v196, 4
      %v199 = vsel %vm185, %v197, %v198
      %vm200 = vcmask 1031168
      %v201 = vsel %vm200, %v194, %v199
      %204 = vst [vmem:[#allocation2 + $0x18] sm:$0xff] %v201
      %205 = vst.msk [vmem:[#allocation2 + $0x20] sm:$0xf] %vm175, %v196
      %206 = vrot.lane.b32.xlu0 %v172, 110
      %v207 = vpop.permute.xlu0 %206
      %208 = vrot.lane.b32.xlu0 %v173, 110
      %v209 = vpop.permute.xlu0 %208
      %v210 = vrot.slane %v207, 4
      %v211 = vrot.slane %v209, 4
      %v212 = vsel %vm185, %v210, %v211
      %vm213 = vcmask 900096
      %v214 = vsel %vm213, %v207, %v212
      %217 = vst [vmem:[#allocation2 + $0x24] sm:$0xff] %v214
      %218 = vst.msk [vmem:[#allocation2 + $0x2c] sm:$0xf] %vm175, %v209
      %219 = vrot.lane.b32.xlu0 %v172, 109
      %v220 = vpop.permute.xlu0 %219
      %221 = vrot.lane.b32.xlu0 %v173, 109
      %v222 = vpop.permute.xlu0 %221
      %v223 = vrot.slane %v220, 4
      %v224 = vrot.slane %v222, 4
      %v225 = vsel %vm185, %v223, %v224
      %vm226 = vcmask 891904
      %v227 = vsel %vm226, %v220, %v225
      %230 = vst [vmem:[#allocation2 + $0x30] sm:$0xff] %v227
      %231 = vst.msk [vmem:[#allocation2 + $0x38] sm:$0xf] %vm175, %v222
      %232 = vrot.lane.b32.xlu0 %v172, 108
      %v233 = vpop.permute.xlu0 %232
      %234 = vrot.lane.b32.xlu0 %v173, 108
      %v235 = vpop.permute.xlu0 %234
      %v236 = vrot.slane %v233, 4
      %v237 = vrot.slane %v235, 4
      %v238 = vsel %vm185, %v236, %v237
      %vm239 = vcmask 883712
      %v240 = vsel %vm239, %v233, %v238
      %243 = vst [vmem:[#allocation2 + $0x3c] sm:$0xff] %v240
      %244 = vst.msk [vmem:[#allocation2 + $0x44] sm:$0xf] %vm175, %v235
      %245 = vrot.lane.b32.xlu0 %v172, 92
      %v246 = vpop.permute.xlu0 %245
      %247 = vrot.lane.b32.xlu0 %v173, 92
      %v248 = vpop.permute.xlu0 %247
      %v249 = vrot.slane %v246, 4
      %v250 = vrot.slane %v248, 4
      %v251 = vsel %vm185, %v249, %v250
      %vm252 = vcmask 752640
      %v253 = vsel %vm252, %v246, %v251
      %256 = vst [vmem:[#allocation2 + $0x48] sm:$0xff] %v253
      %257 = vst.msk [vmem:[#allocation2 + $0x50] sm:$0xf] %vm175, %v248
      %258 = vrot.lane.b32.xlu0 %v172, 91
      %v259 = vpop.permute.xlu0 %258
      %260 = vrot.lane.b32.xlu0 %v173, 91
      %v261 = vpop.permute.xlu0 %260
      %v262 = vrot.slane %v259, 4
      %v263 = vrot.slane %v261, 4
      %v264 = vsel %vm185, %v262, %v263
      %vm265 = vcmask 744448
      %v266 = vsel %vm265, %v259, %v264
      %269 = vst [vmem:[#allocation2 + $0x54] sm:$0xff] %v266
      %270 = vst.msk [vmem:[#allocation2 + $0x5c] sm:$0xf] %vm175, %v261
      %271 = vrot.lane.b32.xlu0 %v172, 90
      %v272 = vpop.permute.xlu0 %271
      %273 = vrot.lane.b32.xlu0 %v173, 90
      %v274 = vpop.permute.xlu0 %273
      %v275 = vrot.slane %v272, 4
      %v276 = vrot.slane %v274, 4
      %v277 = vsel %vm185, %v275, %v276
      %vm278 = vcmask 736256
      %v279 = vsel %vm278, %v272, %v277
      %282 = vst [vmem:[#allocation2 + $0x60] sm:$0xff] %v279
      %283 = vst.msk [vmem:[#allocation2 + $0x68] sm:$0xf] %vm175, %v274
      %v284 = vld [vmem:[%s1] sm:$0x3]
      %v285 = vld [vmem:[#allocation2] sm:$0xff]
      %v286 = vld [vmem:[#allocation2 + $0x8] sm:$0xf]
      %v287 = vld [vmem:[#allocation2 + $0xc] sm:$0xff]
      %v288 = vld [vmem:[#allocation2 + $0x14] sm:$0xf]
      %v289 = vld [vmem:[#allocation2 + $0x18] sm:$0xff]
      %v290 = vld [vmem:[#allocation2 + $0x20] sm:$0xf]
      %v291 = vld [vmem:[#allocation2 + $0x24] sm:$0xff]
      %v292 = vld [vmem:[#allocation2 + $0x2c] sm:$0xf]
      %v293 = vld [vmem:[#allocation2 + $0x30] sm:$0xff]
      %v294 = vld [vmem:[#allocation2 + $0x38] sm:$0xf]
      %v295 = vld [vmem:[#allocation2 + $0x3c] sm:$0xff]
      %v296 = vld [vmem:[#allocation2 + $0x44] sm:$0xf]
      %v297 = vld [vmem:[#allocation2 + $0x48] sm:$0xff]
      %v298 = vld [vmem:[#allocation2 + $0x50] sm:$0xf]
      %v299 = vld [vmem:[#allocation2 + $0x54] sm:$0xff]
      %v300 = vld [vmem:[#allocation2 + $0x5c] sm:$0xf]
      %v301 = vld [vmem:[#allocation2 + $0x60] sm:$0xff]
      %v302 = vld [vmem:[#allocation2 + $0x68] sm:$0xf]
      %v321 = vunpack.c.l.b16 %v285
      %v322 = vunpack.c.h.b16 %v285
      %v323 = vunpack.c.l.b16 %v286
      %v324 = vunpack.c.l.b16 %v287
      %v325 = vunpack.c.h.b16 %v287
      %v326 = vunpack.c.l.b16 %v288
      %v327 = vunpack.c.l.b16 %v289
      %v328 = vunpack.c.h.b16 %v289
      %v329 = vunpack.c.l.b16 %v290
      %v330 = vunpack.c.l.b16 %v291
      %v331 = vunpack.c.h.b16 %v291
      %v332 = vunpack.c.l.b16 %v292
      %v333 = vunpack.c.l.b16 %v293
      %v334 = vunpack.c.h.b16 %v293
      %v335 = vunpack.c.l.b16 %v294
      %v336 = vunpack.c.l.b16 %v295
      %v337 = vunpack.c.h.b16 %v295
      %v338 = vunpack.c.l.b16 %v296
      %v339 = vunpack.c.l.b16 %v297
      %v340 = vunpack.c.h.b16 %v297
      %v341 = vunpack.c.l.b16 %v298
      %v342 = vunpack.c.l.b16 %v299
      %v343 = vunpack.c.h.b16 %v299
      %v344 = vunpack.c.l.b16 %v300
      %v345 = vunpack.c.l.b16 %v301
      %v346 = vunpack.c.h.b16 %v301
      %v347 = vunpack.c.l.b16 %v302
      %v348 = vpack.c.b16 %v324, %v321
      %v349 = vpack.c.b16 %v325, %v322
      %v350 = vpack.c.b16 %v326, %v323
      %v351 = vpack.c.b16 %v330, %v327
      %v352 = vpack.c.b16 %v331, %v328
      %v353 = vpack.c.b16 %v332, %v329
      %v354 = vpack.c.b16 %v336, %v333
      %v355 = vpack.c.b16 %v337, %v334
      %v356 = vpack.c.b16 %v338, %v335
      %v357 = vpack.c.b16 %v342, %v339
      %v358 = vpack.c.b16 %v343, %v340
      %v359 = vpack.c.b16 %v344, %v341
      %v360 = vpack.c.b16 %v345, %v345
      %v361 = vpack.c.b16 %v346, %v346
      %v362 = vpack.c.b16 %v347, %v347
      %vm375 = vcmask 588800
      %v377 = vsel %vm375, %v284, 0
      %vm379 = vcmask 1043456
      %v381 = vsel %vm379, %v360, 0
      %v384 = vsel %vm379, %v361, 0
      %v387 = vsel %vm379, %v362, 0
      %389 = vmatprep.subr.bf16.mxu0 %v349
      %390 = vmatpush1.bf16.msra.mxu0 %v348
      %391 = vmatprep.subr.bf16.mxu0 %v352
      %392 = vmatpush1.bf16.msra.mxu0 %v351
      %393 = vmatprep.subr.bf16.mxu0 %v355
      %394 = vmatpush1.bf16.msra.mxu0 %v354
      %395 = vmatprep.subr.bf16.mxu0 %v358
      %396 = vmatpush1.bf16.msra.mxu0 %v357
      %397 = vmatprep.subr.bf16.mxu0 %v384
      %398 = vmatpush1.bf16.msra.mxu0 %v381
      %399 = vmatprep.subr.bf16.mxu0 0
      %400 = vmatpush1.bf16.msra.mxu0 0
      %401 = vmatprep.subr.bf16.mxu0 0
      %402 = vmatpush1.bf16.msra.mxu0 0
      %403 = vmatprep.subr.bf16.mxu0 0
      %404 = vmatpush1.bf16.msra.mxu0 0
      %405 = vmatprep.subr.bf16.mxu0 0
      %406 = vmatpush1.bf16.msra.mxu0 0
      %407 = vmatprep.subr.bf16.mxu0 0
      %408 = vmatpush1.bf16.msra.mxu0 0
      %409 = vmatprep.subr.bf16.mxu0 0
      %410 = vmatpush1.bf16.msra.mxu0 0
      %411 = vmatprep.subr.bf16.mxu0 0
      %412 = vmatpush1.bf16.msra.mxu0 0
      %413 = vmatprep.subr.bf16.mxu0 0
      %414 = vmatpush1.bf16.msra.mxu0 0
      %415 = vmatprep.subr.bf16.mxu0 0
      %416 = vmatpush1.bf16.msra.mxu0 0
      %417 = vmatprep.subr.bf16.mxu0 0
      %418 = vmatpush1.bf16.msra.mxu0 0
      %419 = vmatprep.subr.bf16.mxu0 0
      %420 = vmatpush1.bf16.msra.mxu0 0
      %421 = vmatprep.mubr.bf16.mxu0 0
      %422 = vmatmul.mubr.bf16.gmra.mrb[0].mxu0 %v377
      %v423 = vpop.f32.mrb[0].mxu0
      %v424 = vadd.f32 0.0, %v423
      %v425 = vpop.f32.mrb[0].mxu0
      %v426 = vadd.f32 0.0, %v425
      %v427 = vpop.f32.mrb[0].mxu0
      %v428 = vpop.f32.mrb[0].mxu0
      %429 = vdwg.mxu0
      %430 = vmatprep.subr.bf16.mxu0 0
      %431 = vmatpush1.bf16.msra.mxu0 %v350
      %432 = vmatprep.subr.bf16.mxu0 0
      %433 = vmatpush1.bf16.msra.mxu0 %v353
      %434 = vmatprep.subr.bf16.mxu0 0
      %435 = vmatpush1.bf16.msra.mxu0 %v356
      %436 = vmatprep.subr.bf16.mxu0 0
      %437 = vmatpush1.bf16.msra.mxu0 %v359
      %438 = vmatprep.subr.bf16.mxu0 0
      %439 = vmatpush1.bf16.msra.mxu0 %v387
      %440 = vmatprep.subr.bf16.mxu0 0
      %441 = vmatpush1.bf16.msra.mxu0 0
      %442 = vmatprep.subr.bf16.mxu0 0
      %443 = vmatpush1.bf16.msra.mxu0 0
      %444 = vmatprep.subr.bf16.mxu0 0
      %445 = vmatpush1.bf16.msra.mxu0 0
      %446 = vmatprep.subr.bf16.mxu0 0
      %447 = vmatpush1.bf16.msra.mxu0 0
      %448 = vmatprep.subr.bf16.mxu0 0
      %449 = vmatpush1.bf16.msra.mxu0 0
      %450 = vmatprep.subr.bf16.mxu0 0
      %451 = vmatpush1.bf16.msra.mxu0 0
      %452 = vmatprep.subr.bf16.mxu0 0
      %453 = vmatpush1.bf16.msra.mxu0 0
      %454 = vmatprep.subr.bf16.mxu0 0
      %455 = vmatpush1.bf16.msra.mxu0 0
      %456 = vmatprep.subr.bf16.mxu0 0
      %457 = vmatpush1.bf16.msra.mxu0 0
      %458 = vmatprep.subr.bf16.mxu0 0
      %459 = vmatpush1.bf16.msra.mxu0 0
      %460 = vmatprep.subr.bf16.mxu0 0
      %461 = vmatpush1.bf16.msra.mxu0 0
      %462 = vmatprep.mubr.bf16.mxu0 0
      %463 = vmatmul.mubr.bf16.gmra.mrb[0].mxu0 %v377
      %v464 = vpop.f32.mrb[0].mxu0
      %v465 = vadd.f32 0.0, %v464
      %v466 = vpop.f32.mrb[0].mxu0
      %v467 = vpop.f32.mrb[0].mxu0
      %v468 = vpop.f32.mrb[0].mxu0
      %469 = vdwg.mxu0
      %v470 = vmax.f32 %v424, 0.0
      %v471 = vmax.f32 %v426, 0.0
      %v472 = vmax.f32 %v465, 0.0
      %v473 = vlaneseq
      %v474 = vand.u32 %v473, 127
      %v475 = vadd.s32 %v474, 128
      %v476 = vadd.s32 %v474, 256
      %vm477 = vcmp.lt.s32.totalorder %v474, 0
      %v478 = vsub.s32 0, %v474
      %v479 = vsel %vm477, %v478, %v474
      %v480 = vmul.u32.u64.compose %v479, 3817748708
      %v481 = vextract.low.u32 %v480
      %v482 = vextract.high.u32 %v480
      %v483 = vshrl.u32 %v482, 4
      %v484 = vmul.u32 %v483, 18
      %v485 = vsub.s32 %v479, %v484
      %v486 = vsub.s32 0, %v485
      %v487 = vsel %vm477, %v486, %v485
      %vm488 = vcmp.lt.s32.totalorder %v475, 0
      %v489 = vsub.s32 0, %v475
      %v490 = vsel %vm488, %v489, %v475
      %v491 = vmul.u32.u64.compose %v490, 3817748708
      %v492 = vextract.low.u32 %v491
      %v493 = vextract.high.u32 %v491
      %v494 = vshrl.u32 %v493, 4
      %v495 = vmul.u32 %v494, 18
      %v496 = vsub.s32 %v490, %v495
      %v497 = vsub.s32 0, %v496
      %v498 = vsel %vm488, %v497, %v496
      %vm499 = vcmp.lt.s32.totalorder %v476, 0
      %v500 = vsub.s32 0, %v476
      %v501 = vsel %vm499, %v500, %v476
      %v502 = vmul.u32.u64.compose %v501, 3817748708
      %v503 = vextract.low.u32 %v502
      %v504 = vextract.high.u32 %v502
      %v505 = vshrl.u32 %v504, 4
      %v506 = vmul.u32 %v505, 18
      %v507 = vsub.s32 %v501, %v506
      %v508 = vsub.s32 0, %v507
      %v509 = vsel %vm499, %v508, %v507
      %vm510 = vcmp.ne.s32.totalorder %v487, 0
      %vm511 = vcmp.ne.s32.totalorder %v498, 0
      %vm512 = vcmp.ne.s32.totalorder %v509, 0
      %vm513 = vcmp.lt.s32.totalorder %v487, 0
      %vm514 = vcmp.lt.s32.totalorder %v498, 0
      %vm515 = vcmp.lt.s32.totalorder %v509, 0
      %vm516 = vmand %vm513, %vm510
      %vm517 = vmand %vm514, %vm511
      %vm518 = vmand %vm515, %vm512
      %v519 = vadd.s32 %v487, 18
      %v520 = vadd.s32 %v498, 18
      %v521 = vadd.s32 %v509, 18
      %v522 = vsel %vm516, %v519, %v487
      %v523 = vsel %vm517, %v520, %v498
      %v524 = vsel %vm518, %v521, %v509
      %vm525 = vcmp.lt.s32.totalorder %v522, 16
      %vm526 = vcmp.lt.s32.totalorder %v523, 16
      %vm527 = vcmp.lt.s32.totalorder %v524, 16
      %v528 = vsel %vm525, 1, 0
      %v529 = vsel %vm526, 1, 0
      %v530 = vsel %vm527, 1, 0
      %vm531 = vcmp.eq.s32.totalorder %v528, 1
      %vm532 = vcmp.eq.s32.totalorder %v529, 1
      %vm533 = vcmp.eq.s32.totalorder %v530, 1
      %v534 = vsel %vm531, %v470, 0.0
      %v535 = vsel %vm532, %v471, 0.0
      %v536 = vsel %vm533, %v472, 0.0
      %v537 = vpack.c.bf16 %v534, %v534
      %v538 = vpack.c.bf16 %v535, %v535
      %v539 = vpack.c.bf16 %v536, %v536
      %vm540 = vcmask 148480
      %541 = vst.msk [vmem:[#allocation3] sm:$0x3] %vm540, 0
      %v545 = vcombine.low %v537, %v538
      %v547 = vunpack.c.l.s4 1983009808
      %v548 = vunpack.c.0.s8 %v547
      %v549 = vlaneseq
      %v550 = vshrl.u32 %v549, 7
      %v551 = vsub.s32 %v548, %v550
      %v552 = vrot.slane %v545, %v551
      %v554 = vunpack.c.l.s4 1983009808
      %v555 = vunpack.c.0.s8 %v554
      %v556 = vlaneseq
      %v557 = vshrl.u32 %v556, 7
      %v558 = vsub.s32 %v555, %v557
      %v559 = vrot.slane %v539, %v558
      %v560 = vcombine.low %v552, %v559
      %561 = vrot.lane.b32.xlu0 %v560, 19
      %v562 = vpop.permute.xlu0 %561
      %v563 = vrot.slane %v562, 6
      %vm564 = vcmask 154624
      %v565 = vsel %vm564, %v563, %v562
      %vm567 = vcmask 1041560
      %vm568 = vcmask 1043458
      %vm569 = vmor %vm568, %vm567
      %vm570 = vcmask 414724
      %vm571 = vmor %vm570, %vm569
      %572 = vst.msk [vmem:[#allocation3] sm:$0x3f] %vm571, %v565
      %vm573 = vcmask 1041816
      %574 = vst.msk [vmem:[#allocation3 + $0x4] sm:$0x3] %vm573, 0
      %v575 = vld [vmem:[#allocation3] sm:$0x3f]
      %v577 = vcombine.high %v575, %v575
      %v579 = vunpack.c.l.s4 1983009808
      %v580 = vunpack.c.0.s8 %v579
      %v581 = vlaneseq
      %v582 = vshrl.u32 %v581, 7
      %v583 = vsub.s32 %v580, %v582
      %v584 = vrot.slane %v575, %v583
      %v586 = vunpack.c.l.s4 1983009808
      %v587 = vunpack.c.0.s8 %v586
      %v588 = vlaneseq
      %v589 = vshrl.u32 %v588, 7
      %v590 = vsub.s32 %v587, %v589
      %v591 = vrot.slane %v577, %v590
      %594 = vst [vmem:[#allocation4] sm:$0x33] %v584
      %vm595 = vcmask 254976
      %596 = vst.msk [vmem:[#allocation4 + $0x8] sm:$0x3] %vm595, %v591
      %v597 = vld [vmem:[#allocation3] sm:$0x3f]
      %v599 = vcombine.low %v597, %v597
      %v601 = vunpack.c.l.s4 1983009808
      %v602 = vunpack.c.0.s8 %v601
      %v603 = vlaneseq
      %v604 = vshrl.u32 %v603, 7
      %v605 = vsub.s32 %v602, %v604
      %v606 = vrot.slane %v599, %v605
      %v608 = vunpack.c.l.s4 1983009808
      %v609 = vunpack.c.0.s8 %v608
      %v610 = vlaneseq
      %v611 = vshrl.u32 %v610, 7
      %v612 = vsub.s32 %v609, %v611
      %v613 = vrot.slane %v597, %v612
      %614 = vrot.lane.b32.xlu0 %v606, 127
      %v615 = vpop.permute.xlu0 %614
      %616 = vrot.lane.b32.xlu0 %v613, 127
      %v617 = vpop.permute.xlu0 %616
      %v618 = vrot.slane %v615, 4
      %v619 = vrot.slane %v617, 4
      %v620 = vsel %vm185, %v618, %v619
      %v621 = vsel %vm187, %v615, %v620
      %624 = vst [vmem:[#allocation4] sm:$0xcc] %v621
      %vm625 = vcmask 257026
      %626 = vst.msk [vmem:[#allocation4 + $0x8] sm:$0xc] %vm625, %v617
      %v627 = vld [vmem:[#allocation3] sm:$0x3f]
      %v629 = vcombine.high %v627, %v627
      %v631 = vunpack.c.l.s4 1983009808
      %v632 = vunpack.c.0.s8 %v631
      %v633 = vlaneseq
      %v634 = vshrl.u32 %v633, 7
      %v635 = vsub.s32 %v632, %v634
      %v636 = vrot.slane %v627, %v635
      %v638 = vunpack.c.l.s4 1983009808
      %v639 = vunpack.c.0.s8 %v638
      %v640 = vlaneseq
      %v641 = vshrl.u32 %v640, 7
      %v642 = vsub.s32 %v639, %v641
      %v643 = vrot.slane %v629, %v642
      %644 = vrot.lane.b32.xlu0 %v636, 126
      %v645 = vpop.permute.xlu0 %644
      %646 = vrot.lane.b32.xlu0 %v643, 126
      %v647 = vpop.permute.xlu0 %646
      %v648 = vrot.slane %v645, 4
      %v649 = vrot.slane %v647, 4
      %v650 = vsel %vm185, %v648, %v649
      %v651 = vsel %vm200, %v645, %v650
      %654 = vst [vmem:[#allocation4 + $0xc] sm:$0x33] %v651
      %655 = vst.msk [vmem:[#allocation4 + $0x14] sm:$0x3] %vm595, %v647
      %v656 = vld [vmem:[#allocation3] sm:$0x3f]
      %v658 = vcombine.low %v656, %v656
      %v660 = vunpack.c.l.s4 1983009808
      %v661 = vunpack.c.0.s8 %v660
      %v662 = vlaneseq
      %v663 = vshrl.u32 %v662, 7
      %v664 = vsub.s32 %v661, %v663
      %v665 = vrot.slane %v658, %v664
      %v667 = vunpack.c.l.s4 1983009808
      %v668 = vunpack.c.0.s8 %v667
      %v669 = vlaneseq
      %v670 = vshrl.u32 %v669, 7
      %v671 = vsub.s32 %v668, %v670
      %v672 = vrot.slane %v656, %v671
      %673 = vrot.lane.b32.xlu0 %v665, 110
      %v674 = vpop.permute.xlu0 %673
      %675 = vrot.lane.b32.xlu0 %v672, 110
      %v676 = vpop.permute.xlu0 %675
      %v677 = vrot.slane %v674, 4
      %v678 = vrot.slane %v676, 4
      %v679 = vsel %vm185, %v677, %v678
      %v680 = vsel %vm213, %v674, %v679
      %683 = vst [vmem:[#allocation4 + $0xc] sm:$0xcc] %v680
      %684 = vst.msk [vmem:[#allocation4 + $0x14] sm:$0xc] %vm625, %v676
      %v685 = vld [vmem:[#allocation3] sm:$0x3f]
      %v687 = vcombine.high %v685, %v685
      %v689 = vunpack.c.l.s4 1983009808
      %v690 = vunpack.c.0.s8 %v689
      %v691 = vlaneseq
      %v692 = vshrl.u32 %v691, 7
      %v693 = vsub.s32 %v690, %v692
      %v694 = vrot.slane %v685, %v693
      %v696 = vunpack.c.l.s4 1983009808
      %v697 = vunpack.c.0.s8 %v696
      %v698 = vlaneseq
      %v699 = vshrl.u32 %v698, 7
      %v700 = vsub.s32 %v697, %v699
      %v701 = vrot.slane %v687, %v700
      %702 = vrot.lane.b32.xlu0 %v694, 109
      %v703 = vpop.permute.xlu0 %702
      %704 = vrot.lane.b32.xlu0 %v701, 109
      %v705 = vpop.permute.xlu0 %704
      %v706 = vrot.slane %v703, 4
      %v707 = vrot.slane %v705, 4
      %v708 = vsel %vm185, %v706, %v707
      %v709 = vsel %vm226, %v703, %v708
      %712 = vst [vmem:[#allocation4 + $0x18] sm:$0x33] %v709
      %713 = vst.msk [vmem:[#allocation4 + $0x20] sm:$0x3] %vm595, %v705
      %v714 = vld [vmem:[#allocation3] sm:$0x3f]
      %v716 = vcombine.low %v714, %v714
      %v718 = vunpack.c.l.s4 1983009808
      %v719 = vunpack.c.0.s8 %v718
      %v720 = vlaneseq
      %v721 = vshrl.u32 %v720, 7
      %v722 = vsub.s32 %v719, %v721
      %v723 = vrot.slane %v716, %v722
      %v725 = vunpack.c.l.s4 1983009808
      %v726 = vunpack.c.0.s8 %v725
      %v727 = vlaneseq
      %v728 = vshrl.u32 %v727, 7
      %v729 = vsub.s32 %v726, %v728
      %v730 = vrot.slane %v714, %v729
      %731 = vrot.lane.b32.xlu0 %v723, 108
      %v732 = vpop.permute.xlu0 %731
      %733 = vrot.lane.b32.xlu0 %v730, 108
      %v734 = vpop.permute.xlu0 %733
      %v735 = vrot.slane %v732, 4
      %v736 = vrot.slane %v734, 4
      %v737 = vsel %vm185, %v735, %v736
      %v738 = vsel %vm239, %v732, %v737
      %741 = vst [vmem:[#allocation4 + $0x18] sm:$0xcc] %v738
      %742 = vst.msk [vmem:[#allocation4 + $0x20] sm:$0xc] %vm625, %v734
      %v743 = vld [vmem:[#allocation3] sm:$0x3f]
      %v745 = vcombine.high %v743, %v743
      %v747 = vunpack.c.l.s4 1983009808
      %v748 = vunpack.c.0.s8 %v747
      %v749 = vlaneseq
      %v750 = vshrl.u32 %v749, 7
      %v751 = vsub.s32 %v748, %v750
      %v752 = vrot.slane %v743, %v751
      %v754 = vunpack.c.l.s4 1983009808
      %v755 = vunpack.c.0.s8 %v754
      %v756 = vlaneseq
      %v757 = vshrl.u32 %v756, 7
      %v758 = vsub.s32 %v755, %v757
      %v759 = vrot.slane %v745, %v758
      %760 = vrot.lane.b32.xlu0 %v752, 92
      %v761 = vpop.permute.xlu0 %760
      %762 = vrot.lane.b32.xlu0 %v759, 92
      %v763 = vpop.permute.xlu0 %762
      %v764 = vrot.slane %v761, 4
      %v765 = vrot.slane %v763, 4
      %v766 = vsel %vm185, %v764, %v765
      %v767 = vsel %vm252, %v761, %v766
      %770 = vst [vmem:[#allocation4 + $0x24] sm:$0x33] %v767
      %771 = vst.msk [vmem:[#allocation4 + $0x2c] sm:$0x3] %vm595, %v763
      %v772 = vld [vmem:[#allocation3] sm:$0x3f]
      %v774 = vcombine.low %v772, %v772
      %v776 = vunpack.c.l.s4 1983009808
      %v777 = vunpack.c.0.s8 %v776
      %v778 = vlaneseq
      %v779 = vshrl.u32 %v778, 7
      %v780 = vsub.s32 %v777, %v779
      %v781 = vrot.slane %v774, %v780
      %v783 = vunpack.c.l.s4 1983009808
      %v784 = vunpack.c.0.s8 %v783
      %v785 = vlaneseq
      %v786 = vshrl.u32 %v785, 7
      %v787 = vsub.s32 %v784, %v786
      %v788 = vrot.slane %v772, %v787
      %789 = vrot.lane.b32.xlu0 %v781, 91
      %v790 = vpop.permute.xlu0 %789
      %791 = vrot.lane.b32.xlu0 %v788, 91
      %v792 = vpop.permute.xlu0 %791
      %v793 = vrot.slane %v790, 4
      %v794 = vrot.slane %v792, 4
      %v795 = vsel %vm185, %v793, %v794
      %v796 = vsel %vm265, %v790, %v795
      %799 = vst [vmem:[#allocation4 + $0x24] sm:$0xcc] %v796
      %800 = vst.msk [vmem:[#allocation4 + $0x2c] sm:$0xc] %vm625, %v792
      %v801 = vld [vmem:[#allocation3] sm:$0x3f]
      %v803 = vcombine.high %v801, %v801
      %v805 = vunpack.c.l.s4 1983009808
      %v806 = vunpack.c.0.s8 %v805
      %v807 = vlaneseq
      %v808 = vshrl.u32 %v807, 7
      %v809 = vsub.s32 %v806, %v808
      %v810 = vrot.slane %v801, %v809
      %v812 = vunpack.c.l.s4 1983009808
      %v813 = vunpack.c.0.s8 %v812
      %v814 = vlaneseq
      %v815 = vshrl.u32 %v814, 7
      %v816 = vsub.s32 %v813, %v815
      %v817 = vrot.slane %v803, %v816
      %818 = vrot.lane.b32.xlu0 %v810, 90
      %v819 = vpop.permute.xlu0 %818
      %820 = vrot.lane.b32.xlu0 %v817, 90
      %v821 = vpop.permute.xlu0 %820
      %v822 = vrot.slane %v819, 4
      %v823 = vrot.slane %v821, 4
      %v824 = vsel %vm185, %v822, %v823
      %v825 = vsel %vm278, %v819, %v824
      %828 = vst [vmem:[#allocation4 + $0x30] sm:$0x33] %v825
      %829 = vst.msk [vmem:[#allocation4 + $0x38] sm:$0x3] %vm595, %v821
      %v830 = vld [vmem:[%s2] sm:$0x3]
      %v831 = vld [vmem:[#allocation4] sm:$0xff]
      %v832 = vld [vmem:[#allocation4 + $0x8] sm:$0xf]
      %v833 = vld [vmem:[#allocation4 + $0xc] sm:$0xff]
      %v834 = vld [vmem:[#allocation4 + $0x14] sm:$0xf]
      %v835 = vld [vmem:[#allocation4 + $0x18] sm:$0xff]
      %v836 = vld [vmem:[#allocation4 + $0x20] sm:$0xf]
      %v837 = vld [vmem:[#allocation4 + $0x24] sm:$0xff]
      %v838 = vld [vmem:[#allocation4 + $0x2c] sm:$0xf]
      %v839 = vld [vmem:[#allocation4 + $0x30] sm:$0x33]
      %v840 = vld [vmem:[#allocation4 + $0x38] sm:$0x3]
      %v851 = vunpack.c.l.b16 %v831
      %v852 = vunpack.c.h.b16 %v831
      %v853 = vunpack.c.l.b16 %v832
      %v854 = vunpack.c.l.b16 %v833
      %v855 = vunpack.c.h.b16 %v833
      %v856 = vunpack.c.l.b16 %v834
      %v857 = vunpack.c.l.b16 %v835
      %v858 = vunpack.c.h.b16 %v835
      %v859 = vunpack.c.l.b16 %v836
      %v860 = vunpack.c.l.b16 %v837
      %v861 = vunpack.c.h.b16 %v837
      %v862 = vunpack.c.l.b16 %v838
      %v863 = vunpack.c.l.b16 %v839
      %v864 = vunpack.c.h.b16 %v839
      %v865 = vunpack.c.l.b16 %v840
      %v866 = vpack.c.b16 %v854, %v851
      %v867 = vpack.c.b16 %v855, %v852
      %v868 = vpack.c.b16 %v856, %v853
      %v869 = vpack.c.b16 %v860, %v857
      %v870 = vpack.c.b16 %v861, %v858
      %v871 = vpack.c.b16 %v862, %v859
      %v872 = vpack.c.b16 %v863, %v863
      %v873 = vpack.c.b16 %v864, %v864
      %v874 = vpack.c.b16 %v865, %v865
      %vm881 = vcmask 293888
      %v883 = vsel %vm881, %v830, 0
      %vm885 = vcmask 1041408
      %v887 = vsel %vm885, %v872, 0
      %v890 = vsel %vm885, %v873, 0
      %v893 = vsel %vm885, %v874, 0
      %895 = vmatprep.subr.bf16.mxu0 %v867
      %896 = vmatpush1.bf16.msra.mxu0 %v866
      %897 = vmatprep.subr.bf16.mxu0 %v870
      %898 = vmatpush1.bf16.msra.mxu0 %v869
      %899 = vmatprep.subr.bf16.mxu0 %v890
      %900 = vmatpush1.bf16.msra.mxu0 %v887
      %901 = vmatprep.subr.bf16.mxu0 0
      %902 = vmatpush1.bf16.msra.mxu0 0
      %903 = vmatprep.subr.bf16.mxu0 0
      %904 = vmatpush1.bf16.msra.mxu0 0
      %905 = vmatprep.subr.bf16.mxu0 0
      %906 = vmatpush1.bf16.msra.mxu0 0
      %907 = vmatprep.subr.bf16.mxu0 0
      %908 = vmatpush1.bf16.msra.mxu0 0
      %909 = vmatprep.subr.bf16.mxu0 0
      %910 = vmatpush1.bf16.msra.mxu0 0
      %911 = vmatprep.subr.bf16.mxu0 0
      %912 = vmatpush1.bf16.msra.mxu0 0
      %913 = vmatprep.subr.bf16.mxu0 0
      %914 = vmatpush1.bf16.msra.mxu0 0
      %915 = vmatprep.subr.bf16.mxu0 0
      %916 = vmatpush1.bf16.msra.mxu0 0
      %917 = vmatprep.subr.bf16.mxu0 0
      %918 = vmatpush1.bf16.msra.mxu0 0
      %919 = vmatprep.subr.bf16.mxu0 0
      %920 = vmatpush1.bf16.msra.mxu0 0
      %921 = vmatprep.subr.bf16.mxu0 0
      %922 = vmatpush1.bf16.msra.mxu0 0
      %923 = vmatprep.subr.bf16.mxu0 0
      %924 = vmatpush1.bf16.msra.mxu0 0
      %925 = vmatprep.subr.bf16.mxu0 0
      %926 = vmatpush1.bf16.msra.mxu0 0
      %927 = vmatprep.mubr.bf16.mxu0 0
      %928 = vmatmul.mubr.bf16.gmra.mrb[0].mxu0 %v883
      %v929 = vpop.f32.mrb[0].mxu0
      %v930 = vadd.f32 0.0, %v929
      %v931 = vpop.f32.mrb[0].mxu0
      %v932 = vadd.f32 0.0, %v931
      %v933 = vpop.f32.mrb[0].mxu0
      %v934 = vpop.f32.mrb[0].mxu0
      %935 = vdwg.mxu0
      %936 = vmatprep.subr.bf16.mxu0 0
      %937 = vmatpush1.bf16.msra.mxu0 %v868
      %938 = vmatprep.subr.bf16.mxu0 0
      %939 = vmatpush1.bf16.msra.mxu0 %v871
      %940 = vmatprep.subr.bf16.mxu0 0
      %941 = vmatpush1.bf16.msra.mxu0 %v893
      %942 = vmatprep.subr.bf16.mxu0 0
      %943 = vmatpush1.bf16.msra.mxu0 0
      %944 = vmatprep.subr.bf16.mxu0 0
      %945 = vmatpush1.bf16.msra.mxu0 0
      %946 = vmatprep.subr.bf16.mxu0 0
      %947 = vmatpush1.bf16.msra.mxu0 0
      %948 = vmatprep.subr.bf16.mxu0 0
      %949 = vmatpush1.bf16.msra.mxu0 0
      %950 = vmatprep.subr.bf16.mxu0 0
      %951 = vmatpush1.bf16.msra.mxu0 0
      %952 = vmatprep.subr.bf16.mxu0 0
      %953 = vmatpush1.bf16.msra.mxu0 0
      %954 = vmatprep.subr.bf16.mxu0 0
      %955 = vmatpush1.bf16.msra.mxu0 0
      %956 = vmatprep.subr.bf16.mxu0 0
      %957 = vmatpush1.bf16.msra.mxu0 0
      %958 = vmatprep.subr.bf16.mxu0 0
      %959 = vmatpush1.bf16.msra.mxu0 0
      %960 = vmatprep.subr.bf16.mxu0 0
      %961 = vmatpush1.bf16.msra.mxu0 0
      %962 = vmatprep.subr.bf16.mxu0 0
      %963 = vmatpush1.bf16.msra.mxu0 0
      %964 = vmatprep.subr.bf16.mxu0 0
      %965 = vmatpush1.bf16.msra.mxu0 0
      %966 = vmatprep.subr.bf16.mxu0 0
      %967 = vmatpush1.bf16.msra.mxu0 0
      %968 = vmatprep.mubr.bf16.mxu0 0
      %969 = vmatmul.mubr.bf16.gmra.mrb[0].mxu0 %v883
      %v970 = vpop.f32.mrb[0].mxu0
      %v971 = vadd.f32 0.0, %v970
      %v972 = vpop.f32.mrb[0].mxu0
      %v973 = vpop.f32.mrb[0].mxu0
      %v974 = vpop.f32.mrb[0].mxu0
      %975 = vdwg.mxu0
      %v976 = vmax.f32 %v930, 0.0
      %v977 = vmax.f32 %v932, 0.0
      %v978 = vmax.f32 %v971, 0.0
      %v981 = vcombine.low %v976, %v977
      %983 = vst [vmem:[%s170] sm:$0xff] %v981
      %984 = vst.msk [vmem:[%s170 + $0x8] sm:$0xf] %vm175, %v978
      %p985 = scmp.lt.s32.totalorder %s14, 1
      %s986 = scalar_select %p985, %s14, 1
      %s987 = smul.addr %s986, 3
      %s988 = smul.addr %s987, 4
      %s989 = scalar_lea.vmem %s3, %s988
      // Predicated region
      $region33: #{up_forward.1} parent=31 // pred_check
        %p990 = pneg %p100
      $region34: #{up_forward.1} parent=31 // pred_check_branch
        %992 = sbr.rel (%p990) target = $region36
      $region35: #{up_forward.1} parent=31 // pred_region
        _
      $region36: #{up_forward.1} parent=31 // pred_fallthru
        _
    $region32: #{up_forward.1} parent=5 // pred_fallthru
      _
    %p993 = scmp.le.s32.totalorder 2, %s9
    // Predicated region
    $region37: #{up_forward.1} parent=5 // pred_check
      %p994 = pneg %p993
    $region38: #{up_forward.1} parent=5 // pred_check_branch
      %996 = sbr.rel (%p994) target = $region40
    $region39: #{up_forward.1} parent=5 // pred_region
      %s997 = ssub.s32 %s9, 2
      // Predicated region
      $region41: #{up_forward.1} parent=39 // pred_check
        %p998 = pneg %p106
      $region42: #{up_forward.1} parent=39 // pred_check_branch
        %1000 = sbr.rel (%p998) target = $region44
      $region43: #{up_forward.1} parent=39 // pred_region
        %p1001 = scmp.lt.s32.totalorder %s15, 1
        %s1002 = scalar_select %p1001, %s15, 1
        %s1003 = smul.addr %s1002, 3
        %s1004 = smul.addr %s1003, 4
        %s1005 = scalar_lea.vmem %s3, %s1004
      $region44: #{up_forward.1} parent=39 // pred_fallthru
        _
    $region40: #{up_forward.1} parent=5 // pred_fallthru
      _
  $region6: #{up_forward.1} parent=0 // loop_footer
    %s13 = sadd.s32 1, %s9
  $region7: #{up_forward.1} parent=0 // loop_footer_branch
    %8 = sbr.rel target = $region3
  $region8: #{up_forward.1} parent=0 // loop_exit
    _

</llo_original>
